<compile_context>
chip_gen: v6e
topology: v6e:2x2x1
jax: 0.10.0
libtpu: 0.0.40
codegen_flags: <defaults>
</compile_context>

<pallas_src>
import functools

import jax
import jax.numpy as jnp
from jax.experimental import pallas as pl
from jax.experimental.pallas import tpu as pltpu

_LANE = 128


def _avg_pool_seq_kernel(x_ref, o_ref, *, scale: int):
    """Mean over non-overlapping length-`scale` windows along the sublane axis.

    x_ref: (TLo * scale, C)   o_ref: (TLo, C)
    """
    tlo = o_ref.shape[0]
    # One strided sublane load per window position; accumulate in f32 on the
    # VPU.  Avoids materializing a retiled (TLo, scale, C) copy in VMEM.
    acc = x_ref[pl.ds(0, tlo, stride=scale), :].astype(jnp.float32)
    for k in range(1, scale):  # scale is static -> fully unrolled
        acc = acc + x_ref[pl.ds(k, tlo, stride=scale), :].astype(jnp.float32)
    o_ref[...] = (acc * (1.0 / scale)).astype(o_ref.dtype)


def _block_budget():
    """(target input-block bytes, vmem_limit_bytes) per TPU generation."""
    try:
        kind = jax.devices()[0].device_kind.lower()
    except Exception:
        kind = ""
    if ("v6" in kind) or ("v7" in kind):
        # Fast HBM (1.4-3.2 TB/s): bigger blocks amortize the ~0.35us/step
        # fixed cost.  Double-buffered 2*(in + in/scale) <= ~24 MiB at scale=2,
        # comfortably inside the explicit 48 MiB limit (and v7x's 64 MiB VMEM).
        return 8 * 1024 * 1024, 48 * 1024 * 1024
    # v5e (16 MiB scoped-VMEM default, ~0.82 TB/s HBM) and older/unknown chips:
    # ~4 MiB blocks already put per-step overhead <10%; stay under the default.
    return 4 * 1024 * 1024, None


def avg_pool1d_seq(x: jax.Array, scale: int, *, block_out_rows: int | None = None) -> jax.Array:
    """x: (B, L, C) -> (B, L // scale, C); identical to
    avg_pool1d(x.permute(0,2,1), scale, scale).permute(0,2,1) in torch."""
    B, L, C = x.shape
    if scale <= 1:
        return x  # kernel=stride=1 pooling is the identity: no launch, no copy.
    Lo = L // scale
    if B == 0 or Lo == 0 or C == 0:
        return jnp.zeros((B, Lo, C), x.dtype)

    itemsize = jnp.dtype(x.dtype).itemsize
    sub = max(8, 32 // itemsize)          # sublane quantum: f32->8, bf16->16, int8->32
    lo_pad = pl.cdiv(Lo, sub) * sub
    c_pad = pl.cdiv(C, _LANE) * _LANE     # VMEM is lane-padded to 128 -- size with that.

    target_bytes, vmem_limit = _block_budget()
    if block_out_rows is None:
        # Bytes per OUTPUT row of padded input block = scale * round_up(C,128) * itemsize.
        block_out_rows = target_bytes // max(1, scale * c_pad * itemsize)
    tlo = max(sub, (block_out_rows // sub) * sub)
    tlo = min(tlo, lo_pad)
    n_l = pl.cdiv(Lo, tlo)

    # Keep both TensorCores fed (v7x megacore): aim for >= 4 parallel grid
    # steps whenever the sequence is long enough to split.
    if block_out_rows is not None and False:
        pass  # (placeholder to keep forced-tiling tests untouched below)
    if (B * n_l < 4) and (Lo > sub):
        want_nl = pl.cdiv(4, B)
        tlo_cap = max(sub, (pl.cdiv(Lo, want_nl) // sub) * sub)
        if tlo_cap < tlo:
            tlo = tlo_cap
            n_l = pl.cdiv(Lo, tlo)

    kernel = functools.partial(_avg_pool_seq_kernel, scale=scale)
    cost = pl.CostEstimate(
        flops=B * Lo * C * scale,
        transcendentals=0,
        bytes_accessed=(B * Lo * scale * C + B * Lo * C) * itemsize,
    )
    cp_kwargs = dict(dimension_semantics=("parallel", "parallel"))
    if vmem_limit is not None:
        cp_kwargs["vmem_limit_bytes"] = vmem_limit

    return pl.pallas_call(
        kernel,
        out_shape=jax.ShapeDtypeStruct((B, Lo, C), x.dtype),
        grid_spec=pltpu.PrefetchScalarGridSpec(
            num_scalar_prefetch=0,
            grid=(B, n_l),
            # Full x is passed (no pre-slice copy); the last L-tile may read
            # padded rows, but those only feed output rows >= Lo, whose stores
            # Pallas masks off.
            in_specs=[pl.BlockSpec((None, tlo * scale, C), lambda b, l: (b, l, 0))],
            out_specs=pl.BlockSpec((None, tlo, C), lambda b, l: (b, l, 0)),
        ),
        compiler_params=pltpu.CompilerParams(**cp_kwargs),
        cost_estimate=cost,
    )(x)


def moving_avg_forward(x, scale: int = 1, if_all: bool = False, data_num: int = 3):
    """JAX/Pallas port of moving_avg.forward."""
    if x is None:
        return None
    if if_all:
        B, L, C, D = x.shape
        # torch stacks tmp[0..2] when data_num == 3, else tmp[0..1].
        keep = 3 if data_num == 3 else 2
        # The D series are adjacent in memory along the last axis, so reshaping
        # to (B, L, C*D) is free; pool once (single kernel launch, lane dim
        # C*D -> denser stores) and reshape back.  If fewer series are kept
        # than present, slice the (scale-x smaller) OUTPUT -- never the full
        # input, which would cost an extra HBM read+write pass.
        y = avg_pool1d_seq(x.reshape(B, L, C * D), scale)
        y = y.reshape(B, y.shape[1], C, D)
        if keep != D:
            y = y[..., :keep]
        return y
    # x: (B, L, C) -> (B, L // scale, C)
    return avg_pool1d_seq(x, scale)


def _reference_pool(x, scale):
    """Plain-JAX reference mirroring torch avg_pool1d(kernel=stride=scale)."""
    if scale == 1:
        return x
    B, L, C = x.shape
    Lo = L // scale
    return jnp.mean(x[:, : Lo * scale, :].reshape(B, Lo, scale, C), axis=2)


if __name__ == "__main__":
    key = jax.random.PRNGKey(0)
    k1, k2, k3, k4 = jax.random.split(key, 4)

    # Case 1: if_all=False, (B, L, C), L divisible by scale.
    B, L, C, scale = 2, 16, 8, 2
    x3 = jax.random.normal(k1, (B, L, C), dtype=jnp.float32)
    out3 = jax.block_until_ready(moving_avg_forward(x3, scale=scale, if_all=False))
    ref3 = _reference_pool(x3, scale)
    assert out3.shape == (B, L // scale, C)
    assert jnp.allclose(out3, ref3, atol=1e-5, rtol=1e-5)

    # Case 2: if_all=True, (B, L, C, data_num) -> fused single kernel launch.
    data_num = 3
    x4 = jax.random.normal(k2, (B, L, C, data_num), dtype=jnp.float32)
    out4 = jax.block_until_ready(
        moving_avg_forward(x4, scale=scale, if_all=True, data_num=data_num))
    ref4 = jnp.stack([_reference_pool(x4[..., i], scale) for i in range(data_num)], axis=3)
    assert out4.shape == (B, L // scale, C, data_num)
    assert jnp.allclose(out4, ref4, atol=1e-5, rtol=1e-5)

    # Case 2b: if_all=True with data_num=2 (torch keeps only the first 2 series).
    out4b = jax.block_until_ready(
        moving_avg_forward(x4, scale=scale, if_all=True, data_num=2))
    ref4b = jnp.stack([_reference_pool(x4[..., i], scale) for i in range(2)], axis=3)
    assert out4b.shape == (B, L // scale, C, 2)
    assert jnp.allclose(out4b, ref4b, atol=1e-5, rtol=1e-5)

    # Case 3: L not divisible by scale + forced multi-tile sequence axis
    # (exercises the masked tail tile; no wrapper-side slice copy is made).
    B2, L2, C2, scale2 = 2, 45, 8, 4          # Lo = 11
    x5 = jax.random.normal(k3, (B2, L2, C2), dtype=jnp.float32)
    out5 = jax.block_until_ready(avg_pool1d_seq(x5, scale2, block_out_rows=8))
    ref5 = _reference_pool(x5, scale2)
    assert out5.shape == (B2, L2 // scale2, C2)
    assert jnp.allclose(out5, ref5, atol=1e-5, rtol=1e-5)

    # Case 4: scale=1 fast path (identity, no kernel launch).
    out6 = moving_avg_forward(x3, scale=1, if_all=False)
    assert out6.shape == x3.shape and bool(jnp.allclose(out6, x3))

    # Case 5: Autoformer-like tiny channel count (C=7), large scale, B=1
    # (exercises lane-padded VMEM sizing and the megacore min-step cap).
    B3, L3, C3, scale3 = 1, 96, 7, 12          # Lo = 8
    x7 = jax.random.normal(k4, (B3, L3, C3), dtype=jnp.float32)
    out7 = jax.block_until_ready(moving_avg_forward(x7, scale=scale3, if_all=False))
    ref7 = _reference_pool(x7, scale3)
    assert out7.shape == (B3, L3 // scale3, C3)
    assert jnp.allclose(out7, ref7, atol=1e-5, rtol=1e-5)

    print("KERNEL_OK")
</pallas_src>

<mosaic_0001>
module attributes {stable_mosaic.version = 11 : i64} {
  func.func @_avg_pool_seq_kernel(%arg0: i32, %arg1: i32, %arg2: memref<1x16x8xf32, #tpu.memory_space<vmem>>, %arg3: memref<1x8x8xf32, #tpu.memory_space<vmem>>) attributes {dimension_semantics = [#tpu.dimension_semantics<parallel>, #tpu.dimension_semantics<parallel>], iteration_bounds = array<i64: 2, 1>, scalar_prefetch = 0 : i64, scratch_operands = 0 : i64, tpu.core_type = #tpu.core_type<tc>, window_params = [{transform_indices = @transform_0, window_bounds = array<i64: 1, 16, 8>}, {transform_indices = @transform_1, window_bounds = array<i64: 1, 8, 8>}]} {
    %c0 = arith.constant 0 : index
    %c0_0 = arith.constant 0 : index
    %c0_1 = arith.constant 0 : index
    %0 = tpu.strided_load %arg2[%c0, %c0_0, %c0_1] {strides = array<i32: 1, 2, 1>} : memref<1x16x8xf32, #tpu.memory_space<vmem>>, vector<1x8x8xf32>
    %1 = vector.shape_cast %0 : vector<1x8x8xf32> to vector<8x8xf32>
    %c0_2 = arith.constant 0 : index
    %c1 = arith.constant 1 : index
    %c0_3 = arith.constant 0 : index
    %2 = tpu.strided_load %arg2[%c0_2, %c1, %c0_3] {strides = array<i32: 1, 2, 1>} : memref<1x16x8xf32, #tpu.memory_space<vmem>>, vector<1x8x8xf32>
    %3 = vector.shape_cast %2 : vector<1x8x8xf32> to vector<8x8xf32>
    %4 = arith.addf %1, %3 : vector<8x8xf32>
    %cst = arith.constant 5.000000e-01 : f32
    %5 = vector.broadcast %cst : f32 to vector<8x8xf32>
    %6 = arith.mulf %4, %5 : vector<8x8xf32>
    %c0_4 = arith.constant 0 : index
    %c0_5 = arith.constant 0 : index
    %c0_6 = arith.constant 0 : index
    %7 = vector.load %arg3[%c0_4, %c0_5, %c0_6] : memref<1x8x8xf32, #tpu.memory_space<vmem>>, vector<1x8x8xf32>
    %8 = vector.shape_cast %7 : vector<1x8x8xf32> to vector<8x8xf32>
    %9 = vector.shape_cast %6 : vector<8x8xf32> to vector<1x8x8xf32>
    tpu.vector_store %arg3[%c0_4, %c0_5, %c0_6], %9 {strides = array<i32>} : memref<1x8x8xf32, #tpu.memory_space<vmem>>, vector<1x8x8xf32>,
    return
  }
  func.func @transform_0(%arg0: i32, %arg1: i32) -> (i32, i32, i32) {
    %c0_i32 = arith.constant 0 : i32
    %c0_i32_0 = arith.constant 0 : i32
    return %arg0, %arg1, %c0_i32 : i32, i32, i32
  }
  func.func @transform_1(%arg0: i32, %arg1: i32) -> (i32, i32, i32) {
    %c0_i32 = arith.constant 0 : i32
    %c0_i32_0 = arith.constant 0 : i32
    return %arg0, %arg1, %c0_i32 : i32, i32, i32
  }
}

</mosaic_0001>

<llo_original>
// kernel: tpu_custom_call.1
$region0: #{tpu_custom_call.1}
  #allocation0 [shape = 'u32[]', space=smem, size = 0x4, offset = 0x4, fixed_abs, tag = 'smem constant byte address 0x4 - core index']
  #allocation1 [shape = 'u32[144,128]{1,0:T(1,128)}', space=vmem, size = 0x12000, scoped, tag = 'internal scratch']
  %s0 = inlined_call_operand.vmem [shape: f32[2,16,8], index: 0, kind: input, shape index: {}]
  %s1 = inlined_call_operand.hbm [shape: f32[2,8,8], index: 1, kind: output, shape index: {}]
  %s2 = sld [smem:[#allocation0]]
  $region37: #{tpu_custom_call.1} parent=0
    _
  %s4 = ssub.s32 1, %s2
  %s5 = scalar_select 0, %s4, %s2
  $region1: #{tpu_custom_call.1} parent=0
    #allocation2 [shape = 'u8[8192]{0}', space=vmem, size = 0x2000, scoped, tag = 'output window, operand 0']
    #allocation3 [shape = 's32[2]{0}', space=sflag, size = 0x8, scoped, tag = 'scoped memory for tpu_custom_call.1']
    %6 = vsyncpa [#allocation3], 0
    %s7 = scalar_lea.sflag [#allocation3], 1
    %8 = vsyncpa %s7, 0
    loop: start=0, step=1, limit=4
    $region2: #{tpu_custom_call.1} parent=1 // loop_pre_header
      _
    $region3: #{tpu_custom_call.1} parent=1 // loop_header
      %s10 = sphi 0, %s14
      %p11 = scmp.ge.s32.totalorder %s10, 4
      %s17 = sphi 0, %s29
      %s18 = sphi 0, %s25
      %s19 = sphi 0, %s17
      %s20 = sphi 0, %s18
      %s21 = sphi 0, %s19
      %s22 = sphi 0, %s20
      %s34 = sphi 0, %s36
      %s37 = sphi 0, %s34
      %s38 = sphi 0, %s37
      %s54 = sphi 0, %s38
      %s62 = sphi 0, %s64
      %s65 = sphi 0, %s62
      %s66 = sphi 0, %s65
      %s82 = sphi 0, %s66
    $region4: #{tpu_custom_call.1} parent=1 // loop_header_branch
      %13 = sbr.rel (%p11) target = $region8
    $region5: #{tpu_custom_call.1} parent=1 // loop_body
      %s15 = ssub.s32 %s10, 1
      %s16 = ssub.s32 %s10, 2
      %s23 = sadd.s32 1, %s18
      %p24 = scmp.ge.s32.totalorder %s23, 1
      %s25 = scalar_select %p24, 0, %s23
      %s26 = sadd.s32 1, %s17
      %s27 = scalar_select %p24, %s26, %s17
      %p28 = scmp.ge.s32.totalorder %s27, 2
      %s29 = scalar_select %p28, 0, %s27
      %s30 = ssub.s32 %s17, %s29
      %s31 = ssub.s32 %s18, %s25
      %s32 = sor.u32 %s30, %s31
      %p33 = scmp.eq.s32.totalorder %s32, 0
      %s35 = sadd.s32 %s34, 1
      %s36 = scalar_select %p33, %s34, %s35
      %p39 = pneg %p33
      %p40 = scmp.eq.s32.totalorder %s10, 1
      %p41 = por %p39, %p40
      %p42 = scmp.ne.s32.totalorder %s34, %s37
      %p43 = scmp.eq.s32.totalorder %s10, 0
      %p44 = por %p42, %p43
      %p45 = scmp.ne.s32.totalorder %s34, %s37
      %p46 = scmp.eq.s32.totalorder %s15, 1
      %p47 = por %p45, %p46
      %p48 = scmp.ne.s32.totalorder %s37, %s38
      %p49 = scmp.eq.s32.totalorder %s15, 0
      %p50 = por %p48, %p49
      %p51 = scmp.ne.s32.totalorder %s37, %s38
      %p52 = scmp.eq.s32.totalorder %s16, 1
      %p53 = por %p51, %p52
      %p55 = scmp.ne.s32.totalorder %s38, %s54
      %p56 = scmp.eq.s32.totalorder %s16, 0
      %p57 = por %p55, %p56
      %s58 = ssub.s32 %s17, %s29
      %s59 = ssub.s32 %s18, %s25
      %s60 = sor.u32 %s58, %s59
      %p61 = scmp.eq.s32.totalorder %s60, 0
      %s63 = sadd.s32 %s62, 1
      %s64 = scalar_select %p61, %s62, %s63
      %p67 = pneg %p61
      %p68 = scmp.eq.s32.totalorder %s10, 1
      %p69 = por %p67, %p68
      %p70 = scmp.ne.s32.totalorder %s62, %s65
      %p71 = scmp.eq.s32.totalorder %s10, 0
      %p72 = por %p70, %p71
      %p73 = scmp.ne.s32.totalorder %s62, %s65
      %p74 = scmp.eq.s32.totalorder %s15, 1
      %p75 = por %p73, %p74
      %p76 = scmp.ne.s32.totalorder %s65, %s66
      %p77 = scmp.eq.s32.totalorder %s15, 0
      %p78 = por %p76, %p77
      %p79 = scmp.ne.s32.totalorder %s65, %s66
      %p80 = scmp.eq.s32.totalorder %s16, 1
      %p81 = por %p79, %p80
      %p83 = scmp.ne.s32.totalorder %s66, %s82
      %p84 = scmp.eq.s32.totalorder %s16, 0
      %p85 = por %p83, %p84
      %p86 = scmp.le.s32.totalorder 1, %s10
      %p87 = scmp.lt.s32.totalorder %s10, 3
      %p88 = pnand %p86, %p87
      %p89 = pneg %p88
      // Predicated region
      $region9: #{tpu_custom_call.1} parent=5 // pred_check
        _
      $region10: #{tpu_custom_call.1} parent=5 // pred_check_branch
        %91 = sbr.rel (%p88) target = $region12
      $region11: #{tpu_custom_call.1} parent=5 // pred_region
        %s92 = ssub.s32 %s10, 1
      $region12: #{tpu_custom_call.1} parent=5 // pred_fallthru
        _
      %p93 = scmp.lt.s32.totalorder %s10, 2
      // Predicated region
      $region13: #{tpu_custom_call.1} parent=5 // pred_check
        %p94 = pneg %p93
      $region14: #{tpu_custom_call.1} parent=5 // pred_check_branch
        %96 = sbr.rel (%p94) target = $region16
      $region15: #{tpu_custom_call.1} parent=5 // pred_region
        // Predicated region
        $region17: #{tpu_custom_call.1} parent=15 // pred_check
          %p97 = pneg %p44
        $region18: #{tpu_custom_call.1} parent=15 // pred_check_branch
          %99 = sbr.rel (%p97) target = $region20
        $region19: #{tpu_custom_call.1} parent=15 // pred_region
          %s100 = smul.u32 2, %s18
          %p101 = scmp.lt.s32.totalorder %s17, 1
          %s102 = scalar_select %p101, %s17, 1
          %p103 = scmp.lt.s32.totalorder %s100, 1
          %s104 = scalar_select %p103, %s100, 1
          %s105 = smul.addr %s102, 2
          %s106 = sadd.s32 %s104, %s105
          %s107 = smul.addr %s106, 8
          %s108 = scalar_lea.vmem %s0, %s107
          %s109 = smul.u32 2, %s18
        $region20: #{tpu_custom_call.1} parent=15 // pred_fallthru
          _
      $region16: #{tpu_custom_call.1} parent=5 // pred_fallthru
        _
      %p110 = scmp.le.s32.totalorder 1, %s10
      %p111 = scmp.lt.s32.totalorder %s10, 3
      %p112 = pnand %p110, %p111
      %p113 = pneg %p112
      // Predicated region
      $region21: #{tpu_custom_call.1} parent=5 // pred_check
        _
      $region22: #{tpu_custom_call.1} parent=5 // pred_check_branch
        %115 = sbr.rel (%p112) target = $region24
      $region23: #{tpu_custom_call.1} parent=5 // pred_region
        %s116 = ssub.s32 %s10, 1
        %s117 = smul.u32 2, %s20
        %p118 = scmp.lt.s32.totalorder %s19, 1
        %s119 = scalar_select %p118, %s19, 1
        %p120 = scmp.lt.s32.totalorder %s117, 1
        %s121 = scalar_select %p120, %s117, 1
        %s122 = smul.addr %s119, 2
        %s123 = sadd.s32 %s121, %s122
        %s124 = smul.addr %s123, 8
        %s125 = scalar_lea.vmem %s0, %s124
        %p126 = pneg %p50
        %p127 = pneg %p47
        %p128 = pneg %p78
        %p129 = pneg %p75
        %s130 = sand.u32 %s65, 1
        %s131 = scalar_lea.sflag [#allocation3], %s130
        %s132 = sand.u32 %s65, 1
        %s133 = smul.addr %s132, 8
        %s134 = scalar_lea.vmem [#allocation2], %s133
        %s135 = smul.u32 2, %s20
        %p136 = scmp.lt.s32.totalorder %s19, 1
        %s137 = scalar_select %p136, %s19, 1
        %p138 = scmp.lt.s32.totalorder %s135, 1
        %s139 = scalar_select %p138, %s135, 1
        %s140 = smul.addr %s137, 2
        %s141 = sadd.s32 %s139, %s140
        %s142 = smul.addr %s141, 8
        %s143 = scalar_lea.vmem %s0, %s142
        %s144 = smul.u32 2, %s20
        %v145 = vld [vmem:[%s143] ss:$2 sm:$0xff]
        %s146 = scalar_lea.vmem %s143, 1
        %v147 = vld [vmem:[%s146] ss:$2 sm:$0xff]
        %v148 = vadd.f32 %v145, %v147
        %v149 = vmul.f32 %v148, 0.5
        %vm150 = vcmask 64512
        %151 = vst.msk [vmem:[%s134] sm:$0xff] %vm150, %v149
        %s152 = sand.u32 %s65, 1
        %s153 = scalar_lea.sflag [#allocation3], %s152
        %s154 = sand.u32 %s65, 1
        %s155 = smul.addr %s154, 8
        %s156 = scalar_lea.vmem [#allocation2], %s155
        // Predicated region
        $region25: #{tpu_custom_call.1} parent=23 // pred_check
          %p157 = pneg %p75
        $region26: #{tpu_custom_call.1} parent=23 // pred_check_branch
          %159 = sbr.rel (%p157) target = $region28
        $region27: #{tpu_custom_call.1} parent=23 // pred_region
          %s161 = ssub.s32 128, 128
          %162 = vsyncadd %s153, %s161
          %s163 = sadd.s32 %s20, %s19
          %s164 = smul.addr %s163, 128
          %s165 = scalar_lea.hbm %s1, %s164
          %s167 = sshll.u32 %s156, 4
          %s168 = int_to_ptr.vmem [resolvable:$true] %s167
          %170 = dma.vmem_to_hbm [thread:$0]  %s168, 128, %s165, %s153
        $region28: #{tpu_custom_call.1} parent=23 // pred_fallthru
          _
      $region24: #{tpu_custom_call.1} parent=5 // pred_fallthru
        _
      %p171 = scmp.le.s32.totalorder 2, %s10
      // Predicated region
      $region29: #{tpu_custom_call.1} parent=5 // pred_check
        %p172 = pneg %p171
      $region30: #{tpu_custom_call.1} parent=5 // pred_check_branch
        %174 = sbr.rel (%p172) target = $region32
      $region31: #{tpu_custom_call.1} parent=5 // pred_region
        %s175 = ssub.s32 %s10, 2
        // Predicated region
        $region33: #{tpu_custom_call.1} parent=31 // pred_check
          %p176 = pneg %p81
        $region34: #{tpu_custom_call.1} parent=31 // pred_check_branch
          %178 = sbr.rel (%p176) target = $region36
        $region35: #{tpu_custom_call.1} parent=31 // pred_region
          %s179 = sand.u32 %s66, 1
          %s180 = scalar_lea.sflag [#allocation3], %s179
          %s181 = sand.u32 %s66, 1
          %s182 = smul.addr %s181, 8
          %s183 = scalar_lea.vmem [#allocation2], %s182
          %184 = dma.done %s180, 128
        $region36: #{tpu_custom_call.1} parent=31 // pred_fallthru
          _
      $region32: #{tpu_custom_call.1} parent=5 // pred_fallthru
        _
    $region6: #{tpu_custom_call.1} parent=1 // loop_footer
      %s14 = sadd.s32 1, %s10
    $region7: #{tpu_custom_call.1} parent=1 // loop_footer_branch
      %9 = sbr.rel target = $region3
    $region8: #{tpu_custom_call.1} parent=1 // loop_exit
      _
    %185 = vsyncpa [#allocation3], 1
    %s186 = scalar_lea.sflag [#allocation3], 1
    %187 = vsyncpa %s186, 1

</llo_original>
